<compile_context>
chip_gen: v6e
topology: v6e:2x2x1
jax: 0.10.0
libtpu: 0.0.40
codegen_flags: <defaults>
</compile_context>

<pallas_src>
import jax
import jax.numpy as jnp
from jax.experimental import pallas as pl
from jax.experimental.pallas import tpu as pltpu


# --------------------------------------------------------------------------- #
# Kernel
# --------------------------------------------------------------------------- #
def _pos_embed_kernel(x_ref, emb_ref, o_ref):
    # x_ref / o_ref: (Bt, TS, TC); emb_ref: (TS, TC) in the table's dtype.
    # Broadcast add over the packed batch rows; per-tile cast is free (VPU).
    o_ref[...] = x_ref[...] + emb_ref[...].astype(o_ref.dtype)


# --------------------------------------------------------------------------- #
# Tiling (trace-time Python)
# --------------------------------------------------------------------------- #
def _round_up(v, m):
    return ((v + m - 1) // m) * m


def _pick_tiles(B, S_log, C, x_item, cap_bytes):
    """Pick (Bt, TS, TC) for an x block (Bt, TS, TC) targeting <= cap_bytes.
    TS is a multiple of 8; TC is the full last dim or a multiple of 128."""
    # Lane (last) dim first: as wide as possible.
    max_tc = max(1, cap_bytes // (8 * x_item))
    if C <= max_tc:
        TC = C                                    # full dim (legal for any C)
    else:
        TC = max(128, (max_tc // 128) * 128)      # multiple of 128, cdiv grid
    # Sublane (second-to-last) dim: multiple of 8, never more than padded S.
    max_rows = max(8, cap_bytes // (TC * x_item))
    TS = min((max_rows // 8) * 8, _round_up(S_log, 8))
    # Pack batch rows so blocks stay near the cap when the (TS, TC) slab is small.
    Bt = max(1, min(B, cap_bytes // (TS * TC * x_item)))
    return Bt, TS, TC


# --------------------------------------------------------------------------- #
# pallas_call wrapper on the logical (B, S', C) view
# --------------------------------------------------------------------------- #
def _pos_embed_call(x3, emb2, cap_bytes, alias_x):
    """out[b, s, c] = x3[b, s, c] + emb2[s, c] (result in x3.dtype).
    emb2 may have more rows than x3.shape[1] (raw embedding table)."""
    B, S_log, C = x3.shape
    x_item = jnp.dtype(x3.dtype).itemsize
    t_item = jnp.dtype(emb2.dtype).itemsize
    Bt, TS, TC = _pick_tiles(B, S_log, C, x_item, cap_bytes)

    # Double-buffered x + out + emb blocks, plus margin; >=32 MiB lifts v5e's
    # 16 MiB default scoped limit, <=56 MiB stays under v7x's 64 MiB physical.
    need = 2 * (2 * Bt * TS * TC * x_item + TS * TC * t_item)
    vmem_limit = int(min(56 << 20, max(32 << 20, need + (8 << 20))))

    grid = (pl.cdiv(S_log, TS), pl.cdiv(C, TC), pl.cdiv(B, Bt))
    return pl.pallas_call(
        _pos_embed_kernel,
        out_shape=jax.ShapeDtypeStruct(x3.shape, x3.dtype),
        grid_spec=pltpu.PrefetchScalarGridSpec(
            num_scalar_prefetch=0,
            # batch innermost -> emb tile index constant across b -> fetched once
            grid=grid,
            in_specs=[
                pl.BlockSpec((Bt, TS, TC), lambda s, c, b: (b, s, c)),
                pl.BlockSpec((TS, TC), lambda s, c, b: (s, c)),
            ],
            out_specs=pl.BlockSpec((Bt, TS, TC), lambda s, c, b: (b, s, c)),
        ),
        compiler_params=pltpu.CompilerParams(
            dimension_semantics=("parallel", "parallel", "parallel"),
            vmem_limit_bytes=vmem_limit,
        ),
        input_output_aliases=({0: 0} if alias_x else {}),
    )(x3, emb2)


# --------------------------------------------------------------------------- #
# Public wrapper
# --------------------------------------------------------------------------- #
def pos_embed(x, embed_table, *, block_cap_bytes=4 << 20, donate_x=False):
    """x: [B, S, D]; embed_table: [num_embeds, D] with num_embeds >= S.

    donate_x=True aliases x's buffer to the output (only if the caller no
    longer needs x and donates it at the jit boundary).
    """
    B, S, D = x.shape
    num_embeds, Dt = embed_table.shape
    assert Dt == D and num_embeds >= S

    if D % 128 == 0:
        # Lane-dense already; pass the RAW table (no wrapper slice/copy/cast).
        return _pos_embed_call(x, embed_table, block_cap_bytes, donate_x)

    if (S * D) % 8 == 0:
        # Fold (S, D) -> (8, S*D/8): dense sublanes/lanes even for small D.
        # x/out reshapes are free bitcasts; only S*D table elements are copied.
        C = (S * D) // 8
        x3 = x.reshape(B, 8, C)
        emb2 = embed_table[:S].reshape(8, C)
        out = _pos_embed_call(x3, emb2, block_cap_bytes, donate_x)
        return out.reshape(B, S, D)

    # Rare fallback (S*D not a multiple of 8): masked stores, raw table.
    return _pos_embed_call(x, embed_table, block_cap_bytes, donate_x)


# --------------------------------------------------------------------------- #
# Demo / self-check
# --------------------------------------------------------------------------- #
if __name__ == "__main__":
    key = jax.random.PRNGKey(0)
    k1, k2, k3, k4, k5, k6 = jax.random.split(key, 6)

    # Primary small shapes consistent with the module: batch=2, seq=8, embed_dim=32.
    B, S, D = 2, 8, 32
    num_embeds = 16
    x = jax.random.normal(k1, (B, S, D), dtype=jnp.float32)
    table = jax.random.normal(k2, (num_embeds, D), dtype=jnp.float32)
    out = jax.block_until_ready(pos_embed(x, table))          # folded path
    ref = x + table[:S][None, :, :]
    assert out.shape == (B, S, D)
    assert jnp.allclose(out, ref, atol=1e-6, rtol=1e-6), "mismatch (folded path)"

    # Raw-table lane-dense path (D % 128 == 0), S not a multiple of 8 (ragged tile).
    B2, S2, D2 = 2, 12, 128
    x2 = jax.random.normal(k3, (B2, S2, D2), dtype=jnp.float32)
    table2 = jax.random.normal(k4, (20, D2), dtype=jnp.float32)
    out2 = jax.block_until_ready(pos_embed(x2, table2))
    ref2 = x2 + table2[:S2][None, :, :]
    assert jnp.allclose(out2, ref2, atol=1e-6, rtol=1e-6), "mismatch (3-D path)"

    # bf16 activations with an f32 table -> in-kernel per-tile cast.
    # TODO(synk): PyTorch would promote the result to f32 here; we keep x.dtype.
    x3 = jax.random.normal(k5, (2, 8, 64), dtype=jnp.bfloat16)
    table3 = jax.random.normal(k6, (8, 64), dtype=jnp.float32)
    out3 = jax.block_until_ready(pos_embed(x3, table3))
    ref3 = x3 + table3[:8][None, :, :].astype(jnp.bfloat16)
    assert jnp.allclose(out3.astype(jnp.float32), ref3.astype(jnp.float32),
                        atol=1e-2), "mismatch (mixed-dtype path)"

    print("KERNEL_OK")
</pallas_src>

<mosaic_0001>
module attributes {stable_mosaic.version = 11 : i64} {
  func.func @_pos_embed_kernel(%arg0: i32, %arg1: i32, %arg2: i32, %arg3: memref<2x8x32xf32, #tpu.memory_space<vmem>>, %arg4: memref<8x32xf32, #tpu.memory_space<vmem>>, %arg5: memref<2x8x32xf32, #tpu.memory_space<vmem>>) attributes {dimension_semantics = [#tpu.dimension_semantics<parallel>, #tpu.dimension_semantics<parallel>, #tpu.dimension_semantics<parallel>], iteration_bounds = array<i64: 1, 1, 1>, scalar_prefetch = 0 : i64, scratch_operands = 0 : i64, tpu.core_type = #tpu.core_type<tc>, window_params = [{transform_indices = @transform_0, window_bounds = array<i64: 2, 8, 32>}, {transform_indices = @transform_1, window_bounds = array<i64: 8, 32>}, {transform_indices = @transform_2, window_bounds = array<i64: 2, 8, 32>}]} {
    %c0 = arith.constant 0 : index
    %c0_0 = arith.constant 0 : index
    %c0_1 = arith.constant 0 : index
    %0 = vector.load %arg3[%c0, %c0_0, %c0_1] : memref<2x8x32xf32, #tpu.memory_space<vmem>>, vector<2x8x32xf32>
    %c0_2 = arith.constant 0 : index
    %c0_3 = arith.constant 0 : index
    %1 = vector.load %arg4[%c0_2, %c0_3] : memref<8x32xf32, #tpu.memory_space<vmem>>, vector<8x32xf32>
    %2 = vector.shape_cast %1 : vector<8x32xf32> to vector<1x8x32xf32>
    %3 = vector.broadcast %2 : vector<1x8x32xf32> to vector<2x8x32xf32>
    %4 = arith.addf %0, %3 : vector<2x8x32xf32>
    %c0_4 = arith.constant 0 : index
    %c0_5 = arith.constant 0 : index
    %c0_6 = arith.constant 0 : index
    %5 = vector.load %arg5[%c0_4, %c0_5, %c0_6] : memref<2x8x32xf32, #tpu.memory_space<vmem>>, vector<2x8x32xf32>
    tpu.vector_store %arg5[%c0_4, %c0_5, %c0_6], %4 {strides = array<i32>} : memref<2x8x32xf32, #tpu.memory_space<vmem>>, vector<2x8x32xf32>,
    return
  }
  func.func @transform_0(%arg0: i32, %arg1: i32, %arg2: i32) -> (i32, i32, i32) {
    %c0_i32 = arith.constant 0 : i32
    return %arg2, %arg0, %arg1 : i32, i32, i32
  }
  func.func @transform_1(%arg0: i32, %arg1: i32, %arg2: i32) -> (i32, i32) {
    %c0_i32 = arith.constant 0 : i32
    return %arg0, %arg1 : i32, i32
  }
  func.func @transform_2(%arg0: i32, %arg1: i32, %arg2: i32) -> (i32, i32, i32) {
    %c0_i32 = arith.constant 0 : i32
    return %arg2, %arg0, %arg1 : i32, i32, i32
  }
}

</mosaic_0001>

<llo_original>
// kernel: tpu_custom_call.1
$region0: #{tpu_custom_call.1}
  #allocation0 [shape = 'u32[]', space=smem, size = 0x4, offset = 0x4, fixed_abs, tag = 'smem constant byte address 0x4 - core index']
  #allocation1 [shape = 'u32[144,128]{1,0:T(1,128)}', space=vmem, size = 0x12000, scoped, tag = 'internal scratch']
  %s0 = inlined_call_operand.hbm [shape: f32[2,8,32], index: 0, kind: input, shape index: {}]
  %s1 = inlined_call_operand.hbm [shape: f32[8,32], index: 1, kind: input, shape index: {}]
  %s2 = inlined_call_operand.hbm [shape: f32[2,8,32], index: 2, kind: output, shape index: {}]
  %s3 = sld [smem:[#allocation0]]
  $region26: #{tpu_custom_call.1} parent=0
    _
  %s5 = ssub.s32 1, %s3
  %s6 = scalar_select 0, %s5, %s3
  $region1: #{tpu_custom_call.1} parent=0
    #allocation2 [shape = 'u8[8192]{0}', space=vmem, size = 0x2000, scoped, tag = 'input window, operand 0, single buffered']
    #allocation3 [shape = 's32[1]{0}', space=sflag, size = 0x4, scoped, tag = 'scoped memory for tpu_custom_call.1']
    #allocation4 [shape = 's32[1]{0}', space=sflag, size = 0x4, scoped, tag = 'scoped memory for tpu_custom_call.1']
    #allocation5 [shape = 'u8[4096]{0}', space=vmem, size = 0x1000, scoped, tag = 'input window, operand 1, single buffered']
    #allocation6 [shape = 's32[1]{0}', space=sflag, size = 0x4, scoped, tag = 'scoped memory for tpu_custom_call.1']
    #allocation7 [shape = 'u8[8192]{0}', space=vmem, size = 0x2000, scoped, tag = 'output window, operand 0, single buffered']
    %7 = vsyncpa [#allocation3], 0
    %8 = vsyncpa [#allocation6], 0
    %9 = vsyncpa [#allocation4], 0
    // Predicated region
    $region2: #{tpu_custom_call.1} parent=1 // pred_check
      _
    $region3: #{tpu_custom_call.1} parent=1 // pred_check_branch
      %11 = sbr.rel (0) target = $region5
    $region4: #{tpu_custom_call.1} parent=1 // pred_region
      %s13 = ssub.s32 256, 256
      %14 = vsyncadd [#allocation3], %s13
      %s15 = sshll.u32 [#allocation2], 4
      %s16 = int_to_ptr.vmem [resolvable:$true] %s15
      %21 = dma.hbm_to_vmem [thread:$0]  %s0, 256, %s16, [#allocation3], 128, 128, 8
    $region5: #{tpu_custom_call.1} parent=1 // pred_fallthru
      _
    // Predicated region
    $region6: #{tpu_custom_call.1} parent=1 // pred_check
      _
    $region7: #{tpu_custom_call.1} parent=1 // pred_check_branch
      %23 = sbr.rel (0) target = $region9
    $region8: #{tpu_custom_call.1} parent=1 // pred_region
      %s25 = ssub.s32 128, 128
      %26 = vsyncadd [#allocation6], %s25
      %s28 = sshll.u32 [#allocation5], 4
      %s29 = int_to_ptr.vmem [resolvable:$true] %s28
      %31 = dma.hbm_to_vmem [thread:$0]  %s1, 128, %s29, [#allocation6]
    $region9: #{tpu_custom_call.1} parent=1 // pred_fallthru
      _
    // Predicated region
    $region10: #{tpu_custom_call.1} parent=1 // pred_check
      _
    $region11: #{tpu_custom_call.1} parent=1 // pred_check_branch
      %33 = sbr.rel (0) target = $region13
    $region12: #{tpu_custom_call.1} parent=1 // pred_region
      %34 = dma.done [#allocation3], 256
    $region13: #{tpu_custom_call.1} parent=1 // pred_fallthru
      _
    // Predicated region
    $region14: #{tpu_custom_call.1} parent=1 // pred_check
      _
    $region15: #{tpu_custom_call.1} parent=1 // pred_check_branch
      %36 = sbr.rel (0) target = $region17
    $region16: #{tpu_custom_call.1} parent=1 // pred_region
      %37 = dma.done [#allocation6], 128
    $region17: #{tpu_custom_call.1} parent=1 // pred_fallthru
      _
    %v38 = vld [vmem:[#allocation2] sm:$0xff]
    %v39 = vld [vmem:[#allocation2 + $0x8] sm:$0xff]
    %v40 = vld [vmem:[#allocation5] sm:$0xff]
    %v41 = vadd.f32 %v38, %v40
    %v42 = vadd.f32 %v39, %v40
    %vm43 = vcmask 261120
    %44 = vst.msk [vmem:[#allocation7] sm:$0xff] %vm43, %v41
    %45 = vst.msk [vmem:[#allocation7 + $0x8] sm:$0xff] %vm43, %v42
    // Predicated region
    $region18: #{tpu_custom_call.1} parent=1 // pred_check
      _
    $region19: #{tpu_custom_call.1} parent=1 // pred_check_branch
      %47 = sbr.rel (0) target = $region21
    $region20: #{tpu_custom_call.1} parent=1 // pred_region
      %s49 = ssub.s32 256, 256
      %50 = vsyncadd [#allocation4], %s49
      %s51 = sshll.u32 [#allocation7], 4
      %s52 = int_to_ptr.vmem [resolvable:$true] %s51
      %57 = dma.vmem_to_hbm [thread:$0]  %s52, 256, %s2, [#allocation4], 128, 128, 8
    $region21: #{tpu_custom_call.1} parent=1 // pred_fallthru
      _
    // Predicated region
    $region22: #{tpu_custom_call.1} parent=1 // pred_check
      _
    $region23: #{tpu_custom_call.1} parent=1 // pred_check_branch
      %59 = sbr.rel (0) target = $region25
    $region24: #{tpu_custom_call.1} parent=1 // pred_region
      %60 = dma.done [#allocation4], 256
    $region25: #{tpu_custom_call.1} parent=1 // pred_fallthru
      _
    %61 = vsyncpa [#allocation3], 1
    %62 = vsyncpa [#allocation6], 1
    %63 = vsyncpa [#allocation4], 1

</llo_original>
